<compile_context>
chip_gen: v7x
topology: tpu7x:2x2x1
jax: 0.10.0
libtpu: 0.0.40
codegen_flags: <defaults>
</compile_context>

<pallas_src>
import jax
import jax.numpy as jnp
from jax.experimental import pallas as pl
from jax.experimental.pallas import tpu as pltpu

# Logical (module) shapes.
BATCH = 2
D_IN = 32
D_HID = 64
D_OUT = 32

# Lane (last-dim) padding only.  Sublane/contraction dims (32, 64) stay at
# their logical sizes (multiples of 8, fine for f32 sublanes).
D_HID_PAD = 128   # lane-dense hidden activations
D_OUT_PAD = 128   # lane-dense second-matmul columns (sliced to D_OUT at store)


def _mlp_kernel(x_ref, w1_ref, b1_ref, w2_ref, b2_ref, o_ref):
    # Linear1 + bias + ReLU: (B, 32) @ (32, 128) -> lane-dense (B, 128) on MXU,
    # f32 accumulation; bias add / ReLU are single-vreg VPU ops.
    h = jnp.dot(x_ref[...], w1_ref[...], preferred_element_type=jnp.float32)
    h = jnp.maximum(h + b1_ref[...], 0.0)
    # Linear2 + bias: (B, 128) @ (128, 128).  Rows >= D_HID of w2 are zero, so
    # the zero-padded lanes of h are inert.
    out = jnp.dot(h, w2_ref[...], preferred_element_type=jnp.float32)
    out = out + b2_ref[...]
    # Store only the logical D_OUT lanes; a masked store of a single vreg.
    o_ref[...] = out[:, :D_OUT].astype(o_ref.dtype)
    # TODO(synk): hook.save_tensor('outputs', outputs) is a host-side
    # SMDebugger side effect; the kernel output *is* the tensor that would be
    # saved, so only the save action itself is untranslated.


def pad_params(w1, b1, w2, b2):
    """One-time (init-style) zero padding of weights/biases.

    Only the lane (last) dims are padded to 128; zero columns/rows and zero
    bias entries are inert through matmul + bias + ReLU, so the kernel
    reproduces the unpadded result exactly in the first D_OUT lanes.
    """
    w1p = jnp.zeros((D_IN, D_HID_PAD), w1.dtype).at[:, :D_HID].set(w1)
    b1p = jnp.zeros((1, D_HID_PAD), b1.dtype).at[:, :D_HID].set(b1)
    w2p = jnp.zeros((D_HID_PAD, D_OUT_PAD), w2.dtype).at[:D_HID, :D_OUT].set(w2)
    b2p = jnp.zeros((1, D_OUT_PAD), b2.dtype).at[:, :D_OUT].set(b2)
    return w1p, b1p, w2p, b2p


# Whole-array VMEM residency, no grid, no pipeline bookkeeping.
_VMEM_SPEC = pl.BlockSpec(memory_space=pltpu.MemorySpace.VMEM)


@jax.jit
def debugger_hook_model_forward(x, w1p, b1p, w2p, b2p):
    """Equivalent of DebuggerHookModel(model, hook).forward(x).

    Expects *padded* parameters from `pad_params` (done once at init).
    The whole forward is one jitted program containing a single pallas_call;
    x and the output keep their logical (batch, 32) shapes.
    """
    batch = x.shape[0]
    out = pl.pallas_call(
        _mlp_kernel,
        out_shape=jax.ShapeDtypeStruct((batch, D_OUT), x.dtype),
        in_specs=[_VMEM_SPEC] * 5,
        out_specs=_VMEM_SPEC,
    )(x, w1p, b1p, w2p, b2p)
    # The hook "saves" `outputs`; we simply return them (same forward value).
    return out


def _reference(x, w1, b1, w2, b2):
    h = jnp.maximum(x @ w1 + b1, 0.0)
    return h @ w2 + b2


if __name__ == "__main__":
    key = jax.random.PRNGKey(0)
    kx, k1, kb1, k2, kb2 = jax.random.split(key, 5)

    x = jax.random.normal(kx, (BATCH, D_IN), dtype=jnp.float32)
    # Deterministic synthetic parameters for the inner MLP.
    w1 = jax.random.normal(k1, (D_IN, D_HID), dtype=jnp.float32) * 0.1
    b1 = jax.random.normal(kb1, (1, D_HID), dtype=jnp.float32) * 0.01
    w2 = jax.random.normal(k2, (D_HID, D_OUT), dtype=jnp.float32) * 0.1
    b2 = jax.random.normal(kb2, (1, D_OUT), dtype=jnp.float32) * 0.01

    # One-time parameter padding (init-time cost, not per-forward).
    padded = pad_params(w1, b1, w2, b2)

    out = debugger_hook_model_forward(x, *padded)
    out = jax.block_until_ready(out)

    ref = _reference(x, w1, b1, w2, b2)
    assert out.shape == (BATCH, D_OUT)
    assert jnp.allclose(out, ref, atol=1e-4, rtol=1e-4)

    print("KERNEL_OK")
</pallas_src>

<mosaic_0001>
module attributes {stable_mosaic.version = 11 : i64} {
  func.func @_mlp_kernel(%arg0: memref<2x32xf32, #tpu.memory_space<vmem>>, %arg1: memref<32x128xf32, #tpu.memory_space<vmem>>, %arg2: memref<1x128xf32, #tpu.memory_space<vmem>>, %arg3: memref<128x128xf32, #tpu.memory_space<vmem>>, %arg4: memref<1x128xf32, #tpu.memory_space<vmem>>, %arg5: memref<2x32xf32, #tpu.memory_space<vmem>>) attributes {dimension_semantics = [], scalar_prefetch = 0 : i64, scratch_operands = 0 : i64, tpu.core_type = #tpu.core_type<tc>} {
    %c0 = arith.constant 0 : index
    %c0_0 = arith.constant 0 : index
    %0 = vector.load %arg0[%c0, %c0_0] : memref<2x32xf32, #tpu.memory_space<vmem>>, vector<2x32xf32>
    %c0_1 = arith.constant 0 : index
    %c0_2 = arith.constant 0 : index
    %1 = vector.load %arg1[%c0_1, %c0_2] : memref<32x128xf32, #tpu.memory_space<vmem>>, vector<32x128xf32>
    %cst = arith.constant dense<0.000000e+00> : vector<2x128xf32>
    %2 = tpu.matmul %0, %1, %cst {dimension_numbers = #tpu.dot_dimension_numbers<[1], [0], [0], [1], [0, 0, 1, 1], [], []>} : vector<2x32xf32>, vector<32x128xf32>, vector<2x128xf32> -> vector<2x128xf32>
    %c0_3 = arith.constant 0 : index
    %c0_4 = arith.constant 0 : index
    %3 = vector.load %arg2[%c0_3, %c0_4] : memref<1x128xf32, #tpu.memory_space<vmem>>, vector<1x128xf32>
    %4 = vector.broadcast %3 : vector<1x128xf32> to vector<2x128xf32>
    %5 = arith.addf %2, %4 : vector<2x128xf32>
    %cst_5 = arith.constant 0.000000e+00 : f32
    %6 = vector.broadcast %cst_5 : f32 to vector<2x128xf32>
    %7 = arith.maximumf %5, %6 : vector<2x128xf32>
    %c0_6 = arith.constant 0 : index
    %c0_7 = arith.constant 0 : index
    %8 = vector.load %arg3[%c0_6, %c0_7] : memref<128x128xf32, #tpu.memory_space<vmem>>, vector<128x128xf32>
    %cst_8 = arith.constant dense<0.000000e+00> : vector<2x128xf32>
    %9 = tpu.matmul %7, %8, %cst_8 {dimension_numbers = #tpu.dot_dimension_numbers<[1], [0], [0], [1], [0, 0, 1, 1], [], []>} : vector<2x128xf32>, vector<128x128xf32>, vector<2x128xf32> -> vector<2x128xf32>
    %c0_9 = arith.constant 0 : index
    %c0_10 = arith.constant 0 : index
    %10 = vector.load %arg4[%c0_9, %c0_10] : memref<1x128xf32, #tpu.memory_space<vmem>>, vector<1x128xf32>
    %11 = vector.broadcast %10 : vector<1x128xf32> to vector<2x128xf32>
    %12 = arith.addf %9, %11 : vector<2x128xf32>
    %13 = vector.extract_strided_slice %12 {offsets = [0, 0], sizes = [2, 32], strides = [1, 1]} : vector<2x128xf32> to vector<2x32xf32>
    %c0_11 = arith.constant 0 : index
    %c0_12 = arith.constant 0 : index
    %14 = vector.load %arg5[%c0_11, %c0_12] : memref<2x32xf32, #tpu.memory_space<vmem>>, vector<2x32xf32>
    tpu.vector_store %arg5[%c0_11, %c0_12], %13 {strides = array<i32>} : memref<2x32xf32, #tpu.memory_space<vmem>>, vector<2x32xf32>,
    return
  }
}

</mosaic_0001>

<llo_original>
// kernel: debugger_hook_model_forward.1
$region0: #{debugger_hook_model_forward.1}
  #allocation0 [shape = 'u32[]', space=smem, size = 0x4, offset = 0x4, fixed_abs, tag = 'smem constant byte address 0x4 - core index']
  #allocation1 [shape = 'u32[144,128]{1,0:T(1,128)}', space=vmem, size = 0x12000, scoped, tag = 'internal scratch']
  %s0 = inlined_call_operand.hbm [shape: f32[2,32], index: 0, kind: input, shape index: {}]
  %s1 = inlined_call_operand.hbm [shape: f32[32,128], index: 1, kind: input, shape index: {}]
  %s2 = inlined_call_operand.vmem [shape: f32[1,128], index: 2, kind: input, shape index: {}]
  %s3 = inlined_call_operand.hbm [shape: f32[128,128], index: 3, kind: input, shape index: {}]
  %s4 = inlined_call_operand.vmem [shape: f32[1,128], index: 4, kind: input, shape index: {}]
  %s5 = inlined_call_operand.hbm [shape: f32[2,32], index: 5, kind: output, shape index: {}]
  %s6 = sld [smem:[#allocation0]]
  $region42: #{debugger_hook_model_forward.1} parent=0
    _
  %s8 = ssub.s32 1, %s6
  %s9 = scalar_select 0, %s8, %s6
  $region1: #{debugger_hook_model_forward.1} parent=0
    #allocation2 [shape = 'u8[1024]{0}', space=vmem, size = 0x400, scoped, tag = 'input window, operand 0, single buffered']
    #allocation3 [shape = 's32[1]{0}', space=sflag, size = 0x4, scoped, tag = 'scoped memory for debugger_hook_model_forward.1']
    #allocation4 [shape = 's32[1]{0}', space=sflag, size = 0x4, scoped, tag = 'scoped memory for debugger_hook_model_forward.1']
    #allocation5 [shape = 'u8[16384]{0}', space=vmem, size = 0x4000, scoped, tag = 'input window, operand 1, single buffered']
    #allocation6 [shape = 's32[1]{0}', space=sflag, size = 0x4, scoped, tag = 'scoped memory for debugger_hook_model_forward.1']
    #allocation7 [shape = 'u8[65536]{0}', space=vmem, size = 0x10000, scoped, tag = 'input window, operand 3, single buffered']
    #allocation8 [shape = 'u8[1024]{0}', space=vmem, size = 0x400, scoped, tag = 'output window, operand 0, single buffered']
    %10 = vsyncpa [#allocation3], 0
    %11 = vsyncpa [#allocation6], 0
    %12 = vsyncpa [#allocation4], 0
    // Predicated region
    $region2: #{debugger_hook_model_forward.1} parent=1 // pred_check
      _
    $region3: #{debugger_hook_model_forward.1} parent=1 // pred_check_branch
      %14 = sbr.rel (0) target = $region5
    $region4: #{debugger_hook_model_forward.1} parent=1 // pred_region
      %s16 = ssub.s32 32, 32
      %17 = vsyncadd [#allocation3], %s16
      %s19 = sshll.u32 [#allocation2], 4
      %s20 = int_to_ptr.vmem [resolvable:$true] %s19
      %22 = dma.hbm_to_vmem [thread:$0]  %s0, 32, %s20, [#allocation3]
    $region5: #{debugger_hook_model_forward.1} parent=1 // pred_fallthru
      _
    // Predicated region
    $region6: #{debugger_hook_model_forward.1} parent=1 // pred_check
      _
    $region7: #{debugger_hook_model_forward.1} parent=1 // pred_check_branch
      %24 = sbr.rel (0) target = $region9
    $region8: #{debugger_hook_model_forward.1} parent=1 // pred_region
      %s26 = ssub.s32 512, 512
      %27 = vsyncadd [#allocation6], %s26
      %s28 = sshll.u32 [#allocation5], 4
      %s29 = int_to_ptr.vmem [resolvable:$true] %s28
      %34 = dma.hbm_to_vmem [thread:$0]  %s1, 512, %s29, [#allocation6], 128, 128, 8
    $region9: #{debugger_hook_model_forward.1} parent=1 // pred_fallthru
      _
    // Predicated region
    $region10: #{debugger_hook_model_forward.1} parent=1 // pred_check
      _
    $region11: #{debugger_hook_model_forward.1} parent=1 // pred_check_branch
      %36 = sbr.rel (0) target = $region13
    $region12: #{debugger_hook_model_forward.1} parent=1 // pred_region
      _
    $region13: #{debugger_hook_model_forward.1} parent=1 // pred_fallthru
      _
    // Predicated region
    $region14: #{debugger_hook_model_forward.1} parent=1 // pred_check
      _
    $region15: #{debugger_hook_model_forward.1} parent=1 // pred_check_branch
      %38 = sbr.rel (0) target = $region17
    $region16: #{debugger_hook_model_forward.1} parent=1 // pred_region
      %s40 = ssub.s32 2048, 2048
      %41 = vsyncadd [#allocation6], %s40
      %s42 = sshll.u32 [#allocation7], 4
      %s43 = int_to_ptr.vmem [resolvable:$true] %s42
      %48 = dma.hbm_to_vmem [thread:$0]  %s3, 2048, %s43, [#allocation6], 128, 128, 8
    $region17: #{debugger_hook_model_forward.1} parent=1 // pred_fallthru
      _
    // Predicated region
    $region18: #{debugger_hook_model_forward.1} parent=1 // pred_check
      _
    $region19: #{debugger_hook_model_forward.1} parent=1 // pred_check_branch
      %50 = sbr.rel (0) target = $region21
    $region20: #{debugger_hook_model_forward.1} parent=1 // pred_region
      _
    $region21: #{debugger_hook_model_forward.1} parent=1 // pred_fallthru
      _
    // Predicated region
    $region22: #{debugger_hook_model_forward.1} parent=1 // pred_check
      _
    $region23: #{debugger_hook_model_forward.1} parent=1 // pred_check_branch
      %52 = sbr.rel (0) target = $region25
    $region24: #{debugger_hook_model_forward.1} parent=1 // pred_region
      %53 = dma.done [#allocation3], 32
    $region25: #{debugger_hook_model_forward.1} parent=1 // pred_fallthru
      _
    // Predicated region
    $region26: #{debugger_hook_model_forward.1} parent=1 // pred_check
      _
    $region27: #{debugger_hook_model_forward.1} parent=1 // pred_check_branch
      %55 = sbr.rel (0) target = $region29
    $region28: #{debugger_hook_model_forward.1} parent=1 // pred_region
      %56 = dma.done [#allocation6], 512
    $region29: #{debugger_hook_model_forward.1} parent=1 // pred_fallthru
      _
    // Predicated region
    $region30: #{debugger_hook_model_forward.1} parent=1 // pred_check
      _
    $region31: #{debugger_hook_model_forward.1} parent=1 // pred_check_branch
      %58 = sbr.rel (0) target = $region33
    $region32: #{debugger_hook_model_forward.1} parent=1 // pred_region
      %59 = dma.done [#allocation6], 2048
    $region33: #{debugger_hook_model_forward.1} parent=1 // pred_fallthru
      _
    %v60 = vld [vmem:[#allocation2] sm:$0x3]
    %v61 = vld [vmem:[#allocation5] sm:$0xff]
    %v62 = vld [vmem:[#allocation5 + $0x8] sm:$0xff]
    %v63 = vld [vmem:[#allocation5 + $0x10] sm:$0xff]
    %v64 = vld [vmem:[#allocation5 + $0x18] sm:$0xff]
    %v65 = vld [vmem:[%s2] sm:$0x1]
    %v67 = vlaneseq
    %v68 = vshrl.u32 %v67, 7
    %v69 = vsub.s32 0, %v68
    %v70 = vrot.slane %v65, %v69
    %vm72 = vcmask 261120
    %v74 = vsel %vm72, %v60, 0
    %76 = vmatprep.subr.mxu0 0.0
    %77 = vmatpush1.msra.mxu0 %v61
    %78 = vmatprep.subr.mxu0 0.0
    %79 = vmatpush1.msra.mxu0 %v62
    %80 = vmatprep.subr.mxu0 0.0
    %81 = vmatpush1.msra.mxu0 %v63
    %82 = vmatprep.subr.mxu0 0.0
    %83 = vmatpush1.msra.mxu0 %v64
    %84 = vmatprep.subr.mxu0 0.0
    %85 = vmatpush1.msra.mxu0 0.0
    %86 = vmatprep.subr.mxu0 0.0
    %87 = vmatpush1.msra.mxu0 0.0
    %88 = vmatprep.subr.mxu0 0.0
    %89 = vmatpush1.msra.mxu0 0.0
    %90 = vmatprep.subr.mxu0 0.0
    %91 = vmatpush1.msra.mxu0 0.0
    %92 = vmatprep.subr.mxu0 0.0
    %93 = vmatpush1.msra.mxu0 0.0
    %94 = vmatprep.subr.mxu0 0.0
    %95 = vmatpush1.msra.mxu0 0.0
    %96 = vmatprep.subr.mxu0 0.0
    %97 = vmatpush1.msra.mxu0 0.0
    %98 = vmatprep.subr.mxu0 0.0
    %99 = vmatpush1.msra.mxu0 0.0
    %100 = vmatprep.subr.mxu0 0.0
    %101 = vmatpush1.msra.mxu0 0.0
    %102 = vmatprep.subr.mxu0 0.0
    %103 = vmatpush1.msra.mxu0 0.0
    %104 = vmatprep.subr.mxu0 0.0
    %105 = vmatpush1.msra.mxu0 0.0
    %106 = vmatprep.subr.mxu0 0.0
    %107 = vmatpush1.msra.mxu0 0.0
    %108 = vmatprep.subr.mxu0 0.0
    %109 = vmatpush1.msra.mxu0 0.0
    %110 = vmatprep.subr.mxu0 0.0
    %111 = vmatpush1.msra.mxu0 0.0
    %112 = vmatprep.subr.mxu0 0.0
    %113 = vmatpush1.msra.mxu0 0.0
    %114 = vmatprep.subr.mxu0 0.0
    %115 = vmatpush1.msra.mxu0 0.0
    %116 = vmatprep.subr.mxu0 0.0
    %117 = vmatpush1.msra.mxu0 0.0
    %118 = vmatprep.subr.mxu0 0.0
    %119 = vmatpush1.msra.mxu0 0.0
    %120 = vmatprep.subr.mxu0 0.0
    %121 = vmatpush1.msra.mxu0 0.0
    %122 = vmatprep.subr.mxu0 0.0
    %123 = vmatpush1.msra.mxu0 0.0
    %124 = vmatprep.subr.mxu0 0.0
    %125 = vmatpush1.msra.mxu0 0.0
    %126 = vmatprep.subr.mxu0 0.0
    %127 = vmatpush1.msra.mxu0 0.0
    %128 = vmatprep.subr.mxu0 0.0
    %129 = vmatpush1.msra.mxu0 0.0
    %130 = vmatprep.subr.mxu0 0.0
    %131 = vmatpush1.msra.mxu0 0.0
    %132 = vmatprep.subr.mxu0 0.0
    %133 = vmatpush1.msra.mxu0 0.0
    %134 = vmatprep.subr.mxu0 0.0
    %135 = vmatpush1.msra.mxu0 0.0
    %136 = vmatprep.subr.mxu0 0.0
    %137 = vmatpush1.msra.mxu0 0.0
    %138 = vmatprep.subr.mxu0 0.0
    %139 = vmatpush1.msra.mxu0 0.0
    %140 = vmatprep.mubr.f32.mxu0 0.0
    %141 = vmatmul.mubr.f32.gmra.mrb[0].mxu0 %v74
    %v142 = vpop.f32.mrb[0].mxu0
    %v143 = vadd.f32 %v70, %v142
    %v144 = vpop.f32.mrb[0].mxu0
    %145 = vdwg.mxu0
    %v146 = vmax.f32 %v143, 0.0
    %v147 = vld [vmem:[#allocation7] sm:$0xff]
    %v148 = vld [vmem:[#allocation7 + $0x8] sm:$0xff]
    %v149 = vld [vmem:[#allocation7 + $0x10] sm:$0xff]
    %v150 = vld [vmem:[#allocation7 + $0x18] sm:$0xff]
    %v151 = vld [vmem:[#allocation7 + $0x20] sm:$0xff]
    %v152 = vld [vmem:[#allocation7 + $0x28] sm:$0xff]
    %v153 = vld [vmem:[#allocation7 + $0x30] sm:$0xff]
    %v154 = vld [vmem:[#allocation7 + $0x38] sm:$0xff]
    %v155 = vld [vmem:[#allocation7 + $0x40] sm:$0xff]
    %v156 = vld [vmem:[#allocation7 + $0x48] sm:$0xff]
    %v157 = vld [vmem:[#allocation7 + $0x50] sm:$0xff]
    %v158 = vld [vmem:[#allocation7 + $0x58] sm:$0xff]
    %v159 = vld [vmem:[#allocation7 + $0x60] sm:$0xff]
    %v160 = vld [vmem:[#allocation7 + $0x68] sm:$0xff]
    %v161 = vld [vmem:[#allocation7 + $0x70] sm:$0xff]
    %v162 = vld [vmem:[#allocation7 + $0x78] sm:$0xff]
    %v163 = vld [vmem:[%s4] sm:$0x1]
    %v165 = vlaneseq
    %v166 = vshrl.u32 %v165, 7
    %v167 = vsub.s32 0, %v166
    %v168 = vrot.slane %v163, %v167
    %170 = vmatprep.subr.mxu0 0.0
    %171 = vmatpush1.msra.mxu0 %v147
    %172 = vmatprep.subr.mxu0 0.0
    %173 = vmatpush1.msra.mxu0 %v148
    %174 = vmatprep.subr.mxu0 0.0
    %175 = vmatpush1.msra.mxu0 %v149
    %176 = vmatprep.subr.mxu0 0.0
    %177 = vmatpush1.msra.mxu0 %v150
    %178 = vmatprep.subr.mxu0 0.0
    %179 = vmatpush1.msra.mxu0 %v151
    %180 = vmatprep.subr.mxu0 0.0
    %181 = vmatpush1.msra.mxu0 %v152
    %182 = vmatprep.subr.mxu0 0.0
    %183 = vmatpush1.msra.mxu0 %v153
    %184 = vmatprep.subr.mxu0 0.0
    %185 = vmatpush1.msra.mxu0 %v154
    %186 = vmatprep.subr.mxu0 0.0
    %187 = vmatpush1.msra.mxu0 %v155
    %188 = vmatprep.subr.mxu0 0.0
    %189 = vmatpush1.msra.mxu0 %v156
    %190 = vmatprep.subr.mxu0 0.0
    %191 = vmatpush1.msra.mxu0 %v157
    %192 = vmatprep.subr.mxu0 0.0
    %193 = vmatpush1.msra.mxu0 %v158
    %194 = vmatprep.subr.mxu0 0.0
    %195 = vmatpush1.msra.mxu0 %v159
    %196 = vmatprep.subr.mxu0 0.0
    %197 = vmatpush1.msra.mxu0 %v160
    %198 = vmatprep.subr.mxu0 0.0
    %199 = vmatpush1.msra.mxu0 %v161
    %200 = vmatprep.subr.mxu0 0.0
    %201 = vmatpush1.msra.mxu0 %v162
    %202 = vmatprep.subr.mxu0 0.0
    %203 = vmatpush1.msra.mxu0 0.0
    %204 = vmatprep.subr.mxu0 0.0
    %205 = vmatpush1.msra.mxu0 0.0
    %206 = vmatprep.subr.mxu0 0.0
    %207 = vmatpush1.msra.mxu0 0.0
    %208 = vmatprep.subr.mxu0 0.0
    %209 = vmatpush1.msra.mxu0 0.0
    %210 = vmatprep.subr.mxu0 0.0
    %211 = vmatpush1.msra.mxu0 0.0
    %212 = vmatprep.subr.mxu0 0.0
    %213 = vmatpush1.msra.mxu0 0.0
    %214 = vmatprep.subr.mxu0 0.0
    %215 = vmatpush1.msra.mxu0 0.0
    %216 = vmatprep.subr.mxu0 0.0
    %217 = vmatpush1.msra.mxu0 0.0
    %218 = vmatprep.subr.mxu0 0.0
    %219 = vmatpush1.msra.mxu0 0.0
    %220 = vmatprep.subr.mxu0 0.0
    %221 = vmatpush1.msra.mxu0 0.0
    %222 = vmatprep.subr.mxu0 0.0
    %223 = vmatpush1.msra.mxu0 0.0
    %224 = vmatprep.subr.mxu0 0.0
    %225 = vmatpush1.msra.mxu0 0.0
    %226 = vmatprep.subr.mxu0 0.0
    %227 = vmatpush1.msra.mxu0 0.0
    %228 = vmatprep.subr.mxu0 0.0
    %229 = vmatpush1.msra.mxu0 0.0
    %230 = vmatprep.subr.mxu0 0.0
    %231 = vmatpush1.msra.mxu0 0.0
    %232 = vmatprep.subr.mxu0 0.0
    %233 = vmatpush1.msra.mxu0 0.0
    %234 = vmatprep.mubr.f32.mxu0 0.0
    %235 = vmatmul.mubr.f32.gmra.mrb[0].mxu0 %v146
    %v236 = vpop.f32.mrb[0].mxu0
    %v237 = vadd.f32 %v168, %v236
    %v238 = vpop.f32.mrb[0].mxu0
    %239 = vdwg.mxu0
    %vm240 = vcmask 254976
    %241 = vst.msk [vmem:[#allocation8] sm:$0x3] %vm240, %v237
    // Predicated region
    $region34: #{debugger_hook_model_forward.1} parent=1 // pred_check
      _
    $region35: #{debugger_hook_model_forward.1} parent=1 // pred_check_branch
      %243 = sbr.rel (0) target = $region37
    $region36: #{debugger_hook_model_forward.1} parent=1 // pred_region
      %s245 = ssub.s32 32, 32
      %246 = vsyncadd [#allocation4], %s245
      %s248 = sshll.u32 [#allocation8], 4
      %s249 = int_to_ptr.vmem [resolvable:$true] %s248
      %251 = dma.vmem_to_hbm [thread:$0]  %s249, 32, %s5, [#allocation4]
    $region37: #{debugger_hook_model_forward.1} parent=1 // pred_fallthru
      _
    // Predicated region
    $region38: #{debugger_hook_model_forward.1} parent=1 // pred_check
      _
    $region39: #{debugger_hook_model_forward.1} parent=1 // pred_check_branch
      %253 = sbr.rel (0) target = $region41
    $region40: #{debugger_hook_model_forward.1} parent=1 // pred_region
      %254 = dma.done [#allocation4], 32
    $region41: #{debugger_hook_model_forward.1} parent=1 // pred_fallthru
      _
    %255 = vsyncpa [#allocation3], 1
    %256 = vsyncpa [#allocation6], 1
    %257 = vsyncpa [#allocation4], 1

</llo_original>
